<compile_context>
chip_gen: v7x
topology: tpu7x:2x2x1
jax: 0.10.0
libtpu: 0.0.40
codegen_flags: <defaults>
</compile_context>

<pallas_src>
import functools

import jax
import jax.numpy as jnp
from jax.experimental import pallas as pl
from jax.experimental.pallas import tpu as pltpu

EPS = 1e-6  # LayerNormalization eps = 10**-6


def _layernorm_kernel(params_ref, x_ref, o_ref, *, use_approx_recip):
    """alpha * (x - mean) / (std + eps) + bias over the last axis (per row)."""
    x = x_ref[...].astype(jnp.float32)            # (TR, D) row tile
    d = x.shape[-1]

    alpha = params_ref[0]
    beta = params_ref[1]

    # Moments via E[x] and E[x^2]: two independent lane reductions instead of
    # the serial mean -> (x - mean)^2 -> sum chain.
    mean = jnp.mean(x, axis=-1, keepdims=True)
    mean_sq = jnp.mean(x * x, axis=-1, keepdims=True)
    var = jnp.maximum(mean_sq - mean * mean, 0.0)
    if d > 1:  # torch.std defaults to the unbiased estimator (ddof=1)
        var = var * (d / (d - 1))
    std = jnp.sqrt(var)

    denom = std + EPS
    if use_approx_recip:
        inv = pl.reciprocal(denom, approx=True)   # EUP slot -> ~free on TPU
    else:
        inv = 1.0 / denom                         # portable fallback (interpret/CPU)

    o_ref[...] = (alpha * (x - mean) * inv + beta).astype(o_ref.dtype)


def layer_norm_lastdim(x, alpha, beta, *, tile_rows=256):
    """LayerNormalization over the last axis of x, any leading shape."""
    *lead, D = x.shape
    xf = x.reshape(-1, D)
    N = xf.shape[0]

    # Big row tiles amortize the ~0.35 us per-grid-step overhead; when the
    # whole slab is smaller than one tile, use the full extent (valid block).
    tr = tile_rows if N >= tile_rows else N
    grid = (pl.cdiv(N, tr),)

    params = jnp.array([alpha, beta], dtype=jnp.float32)
    kernel = functools.partial(
        _layernorm_kernel,
        use_approx_recip=(jax.default_backend() == "tpu"),
    )

    out = pl.pallas_call(
        kernel,
        out_shape=jax.ShapeDtypeStruct((N, D), x.dtype),
        grid=grid,
        in_specs=[
            pl.BlockSpec(memory_space=pltpu.MemorySpace.SMEM),  # [alpha, beta]
            pl.BlockSpec((tr, D), lambda i: (i, 0)),            # x row tile
        ],
        out_specs=pl.BlockSpec((tr, D), lambda i: (i, 0)),
        compiler_params=pltpu.CompilerParams(
            # Row tiles are fully independent -> shard the grid axis across
            # TensorCores on v7x; harmless on single-TC v5e/v6e.
            dimension_semantics=("parallel",),
        ),
    )(params, xf)
    return out.reshape(*lead, D)


def encoder_forward(x, mask, layers=(), *, alpha=1.0, beta=0.0):
    """Encoder.forward: apply injected layers, then the final LayerNorm."""
    # TODO(synk): Encoder.layers is an injected nn.ModuleList (self-attention /
    # feed-forward encoder blocks) with no definition in this spec; they are
    # applied here as external JAX callables — only the final
    # LayerNormalization runs as a Pallas kernel.
    for layer in layers:
        x = layer(x, mask)
    return layer_norm_lastdim(x, alpha, beta)


if __name__ == "__main__":
    key = jax.random.PRNGKey(0)
    B, S, D = 2, 8, 128  # d_model multiple of 128 -> lane-dense output stores
    kx, _ = jax.random.split(key)

    x = jax.random.normal(kx, (B, S, D), jnp.float32)
    mask = jnp.ones((B, 1, S, S), jnp.float32)  # passed through to layers only

    # LayerNormalization init: alpha = ones(1), bias = zeros(1); zero injected
    # layers (Encoder with an empty ModuleList reduces to the final norm).
    out = encoder_forward(x, mask, layers=(), alpha=1.0, beta=0.0)
    jax.block_until_ready(out)

    # Pure-JAX reference (torch semantics: unbiased std, ddof=1).  Relaxed
    # tolerance covers the approximate EUP reciprocal on TPU.
    mean = x.mean(-1, keepdims=True)
    std = jnp.std(x, axis=-1, ddof=1, keepdims=True)
    ref = 1.0 * (x - mean) / (std + EPS) + 0.0
    assert jnp.allclose(out, ref, atol=3e-2, rtol=3e-2), "layernorm mismatch"

    print("KERNEL_OK")
</pallas_src>

<mosaic_0001>
module attributes {stable_mosaic.version = 11 : i64} {
  func.func @_layernorm_kernel(%arg0: i32, %arg1: memref<2xf32, #tpu.memory_space<smem>>, %arg2: memref<16x128xf32, #tpu.memory_space<vmem>>, %arg3: memref<16x128xf32, #tpu.memory_space<vmem>>) attributes {dimension_semantics = [#tpu.dimension_semantics<parallel>], iteration_bounds = array<i64: 1>, scalar_prefetch = 0 : i64, scratch_operands = 0 : i64, tpu.core_type = #tpu.core_type<tc>, window_params = [{transform_indices = @transform_0, window_bounds = array<i64: 2>}, {transform_indices = @transform_1, window_bounds = array<i64: 16, 128>}, {transform_indices = @transform_2, window_bounds = array<i64: 16, 128>}]} {
    %c0 = arith.constant 0 : index
    %c0_0 = arith.constant 0 : index
    %0 = vector.load %arg2[%c0, %c0_0] : memref<16x128xf32, #tpu.memory_space<vmem>>, vector<16x128xf32>
    %c0_1 = arith.constant 0 : index
    %1 = memref.load %arg1[%c0_1] : memref<2xf32, #tpu.memory_space<smem>>
    %c1 = arith.constant 1 : index
    %2 = memref.load %arg1[%c1] : memref<2xf32, #tpu.memory_space<smem>>
    %cst = arith.constant dense<0.000000e+00> : vector<16xf32>
    %3 = vector.multi_reduction <add>, %0, %cst [1] : vector<16x128xf32> to vector<16xf32>
    %4 = vector.shape_cast %3 : vector<16xf32> to vector<16x1xf32>
    %cst_2 = arith.constant 1.280000e+02 : f32
    %5 = vector.broadcast %cst_2 : f32 to vector<16x1xf32>
    %6 = arith.divf %4, %5 : vector<16x1xf32>
    %7 = arith.mulf %0, %0 : vector<16x128xf32>
    %cst_3 = arith.constant dense<0.000000e+00> : vector<16xf32>
    %8 = vector.multi_reduction <add>, %7, %cst_3 [1] : vector<16x128xf32> to vector<16xf32>
    %9 = vector.shape_cast %8 : vector<16xf32> to vector<16x1xf32>
    %cst_4 = arith.constant 1.280000e+02 : f32
    %10 = vector.broadcast %cst_4 : f32 to vector<16x1xf32>
    %11 = arith.divf %9, %10 : vector<16x1xf32>
    %12 = arith.mulf %6, %6 : vector<16x1xf32>
    %13 = arith.subf %11, %12 : vector<16x1xf32>
    %cst_5 = arith.constant 0.000000e+00 : f32
    %14 = vector.broadcast %cst_5 : f32 to vector<16x1xf32>
    %15 = arith.maximumf %13, %14 : vector<16x1xf32>
    %cst_6 = arith.constant 1.00787401 : f32
    %16 = vector.broadcast %cst_6 : f32 to vector<16x1xf32>
    %17 = arith.mulf %15, %16 : vector<16x1xf32>
    %18 = math.sqrt %17 : vector<16x1xf32>
    %cst_7 = arith.constant 9.99999997E-7 : f32
    %19 = vector.broadcast %cst_7 : f32 to vector<16x1xf32>
    %20 = arith.addf %18, %19 : vector<16x1xf32>
    %cst_8 = arith.constant 1.000000e+00 : f32
    %21 = vector.broadcast %cst_8 : f32 to vector<16x1xf32>
    %22 = arith.divf %21, %20 : vector<16x1xf32>
    %23 = vector.broadcast %6 : vector<16x1xf32> to vector<16x128xf32>
    %24 = arith.subf %0, %23 : vector<16x128xf32>
    %25 = vector.broadcast %1 : f32 to vector<16x128xf32>
    %26 = arith.mulf %25, %24 : vector<16x128xf32>
    %27 = vector.broadcast %22 : vector<16x1xf32> to vector<16x128xf32>
    %28 = arith.mulf %26, %27 : vector<16x128xf32>
    %29 = vector.broadcast %2 : f32 to vector<16x128xf32>
    %30 = arith.addf %28, %29 : vector<16x128xf32>
    %c0_9 = arith.constant 0 : index
    %c0_10 = arith.constant 0 : index
    %31 = vector.load %arg3[%c0_9, %c0_10] : memref<16x128xf32, #tpu.memory_space<vmem>>, vector<16x128xf32>
    tpu.vector_store %arg3[%c0_9, %c0_10], %30 {strides = array<i32>} : memref<16x128xf32, #tpu.memory_space<vmem>>, vector<16x128xf32>,
    return
  }
  func.func @transform_0(%arg0: i32) -> i32 {
    %c0_i32 = arith.constant 0 : i32
    %c0_i32_0 = arith.constant 0 : i32
    return %c0_i32 : i32
  }
  func.func @transform_1(%arg0: i32) -> (i32, i32) {
    %c0_i32 = arith.constant 0 : i32
    %c0_i32_0 = arith.constant 0 : i32
    return %arg0, %c0_i32 : i32, i32
  }
  func.func @transform_2(%arg0: i32) -> (i32, i32) {
    %c0_i32 = arith.constant 0 : i32
    %c0_i32_0 = arith.constant 0 : i32
    return %arg0, %c0_i32 : i32, i32
  }
}

</mosaic_0001>

<llo_original>
// kernel: tpu_custom_call.1
$region0: #{tpu_custom_call.1}
  #allocation0 [shape = 'u32[]', space=smem, size = 0x4, offset = 0x4, fixed_abs, tag = 'smem constant byte address 0x4 - core index']
  #allocation1 [shape = 'u32[144,128]{1,0:T(1,128)}', space=vmem, size = 0x12000, scoped, tag = 'internal scratch']
  %s0 = inlined_call_operand.hbm [shape: f32[2], index: 0, kind: input, shape index: {}]
  %s1 = inlined_call_operand.hbm [shape: f32[16,128], index: 1, kind: input, shape index: {}]
  %s2 = inlined_call_operand.hbm [shape: f32[16,128], index: 2, kind: output, shape index: {}]
  %s3 = sld [smem:[#allocation0]]
  $region26: #{tpu_custom_call.1} parent=0
    _
  %s5 = ssub.s32 1, %s3
  %s6 = scalar_select 0, %s5, %s3
  $region1: #{tpu_custom_call.1} parent=0
    #allocation2 [shape = 'u8[512]{0}', space=smem, size = 0x200, scoped, tag = 'input window, operand 0, single buffered']
    #allocation3 [shape = 's32[1]{0}', space=sflag, size = 0x4, scoped, tag = 'scoped memory for tpu_custom_call.1']
    #allocation4 [shape = 's32[1]{0}', space=sflag, size = 0x4, scoped, tag = 'scoped memory for tpu_custom_call.1']
    #allocation5 [shape = 's32[1]{0}', space=sflag, size = 0x4, scoped, tag = 'scoped memory for tpu_custom_call.1']
    #allocation6 [shape = 'u8[8192]{0}', space=vmem, size = 0x2000, scoped, tag = 'input window, operand 1, single buffered']
    #allocation7 [shape = 'u8[8192]{0}', space=vmem, size = 0x2000, scoped, tag = 'output window, operand 0, single buffered']
    %7 = vsyncpa [#allocation5], 0
    %8 = vsyncpa [#allocation3], 0
    %9 = vsyncpa [#allocation4], 0
    // Predicated region
    $region2: #{tpu_custom_call.1} parent=1 // pred_check
      _
    $region3: #{tpu_custom_call.1} parent=1 // pred_check_branch
      %11 = sbr.rel (0) target = $region5
    $region4: #{tpu_custom_call.1} parent=1 // pred_region
      %s13 = ssub.s32 16, 16
      %14 = vsyncadd [#allocation5], %s13
      %17 = dma.hbm_to_smem %s0, 16, [#allocation2], [#allocation5]
    $region5: #{tpu_custom_call.1} parent=1 // pred_fallthru
      _
    // Predicated region
    $region6: #{tpu_custom_call.1} parent=1 // pred_check
      _
    $region7: #{tpu_custom_call.1} parent=1 // pred_check_branch
      %19 = sbr.rel (0) target = $region9
    $region8: #{tpu_custom_call.1} parent=1 // pred_region
      %s21 = ssub.s32 256, 256
      %22 = vsyncadd [#allocation3], %s21
      %s23 = sshll.u32 [#allocation6], 4
      %s24 = int_to_ptr.vmem [resolvable:$true] %s23
      %29 = dma.hbm_to_vmem [thread:$0]  %s1, 256, %s24, [#allocation3], 128, 128, 8
    $region9: #{tpu_custom_call.1} parent=1 // pred_fallthru
      _
    // Predicated region
    $region10: #{tpu_custom_call.1} parent=1 // pred_check
      _
    $region11: #{tpu_custom_call.1} parent=1 // pred_check_branch
      %31 = sbr.rel (0) target = $region13
    $region12: #{tpu_custom_call.1} parent=1 // pred_region
      %32 = dma.done [#allocation5], 16
    $region13: #{tpu_custom_call.1} parent=1 // pred_fallthru
      _
    // Predicated region
    $region14: #{tpu_custom_call.1} parent=1 // pred_check
      _
    $region15: #{tpu_custom_call.1} parent=1 // pred_check_branch
      %34 = sbr.rel (0) target = $region17
    $region16: #{tpu_custom_call.1} parent=1 // pred_region
      %35 = dma.done [#allocation3], 256
    $region17: #{tpu_custom_call.1} parent=1 // pred_fallthru
      _
    %36 = sfence
    %v37 = vld [vmem:[#allocation6] sm:$0xff]
    %v38 = vld [vmem:[#allocation6 + $0x8] sm:$0xff]
    %s39 = sld [smem:[#allocation2]]
    %s40 = sld [smem:[#allocation2 + $0x1]]
    %41 = vadd.xlane.f32.xlu0 %v37
    %v42 = vpop.xlane.xlu0 %41
    %43 = vadd.xlane.f32.xlu0 %v38
    %v44 = vpop.xlane.xlu0 %43
    %v45 = vrcp.pop 128.0
    %v46 = vmul.f32 %v42, %v45
    %v47 = vmul.f32 %v44, %v45
    %v48 = vmul.f32 %v37, %v37
    %v49 = vmul.f32 %v38, %v38
    %50 = vadd.xlane.f32.xlu0 %v48
    %v51 = vpop.xlane.xlu0 %50
    %52 = vadd.xlane.f32.xlu0 %v49
    %v53 = vpop.xlane.xlu0 %52
    %v54 = vmul.f32 %v51, %v45
    %v55 = vmul.f32 %v53, %v45
    %v56 = vmul.f32 %v46, %v46
    %v57 = vmul.f32 %v47, %v47
    %v58 = vsub.f32 %v54, %v56
    %v59 = vsub.f32 %v55, %v57
    %v60 = vmax.f32 %v58, 0.0
    %v61 = vmax.f32 %v59, 0.0
    %v62 = vmul.f32 %v60, 1.007874
    %v63 = vmul.f32 %v61, 1.007874
    %v64 = vrsqrt.pop %v62
    %v65 = vmul.f32 %v62, %v64
    %vm66 = vcmp.eq.f32.partialorder %v62, inf
    %v67 = vsel %vm66, %v62, %v65
    %vm68 = vcmp.eq.f32.partialorder %v62, 0.0
    %v69 = vand.u32 %v62, 2147483648
    %v70 = vsel %vm68, %v69, %v67
    %v71 = vrsqrt.pop %v63
    %v72 = vmul.f32 %v63, %v71
    %vm73 = vcmp.eq.f32.partialorder %v63, inf
    %v74 = vsel %vm73, %v63, %v72
    %vm75 = vcmp.eq.f32.partialorder %v63, 0.0
    %v76 = vand.u32 %v63, 2147483648
    %v77 = vsel %vm75, %v76, %v74
    %v78 = vadd.f32 %v70, 1e-06
    %v79 = vadd.f32 %v77, 1e-06
    %v80 = vrcp.pop %v78
    %v81 = vmul.f32 1.0, %v80
    %v82 = vrcp.pop %v79
    %v83 = vmul.f32 1.0, %v82
    %v84 = vsub.f32 %v37, %v46
    %v85 = vsub.f32 %v38, %v47
    %v86 = vstv %s39
    %v87 = vmul.f32 %v86, %v84
    %v88 = vmul.f32 %v86, %v85
    %v89 = vmul.f32 %v87, %v81
    %v90 = vmul.f32 %v88, %v83
    %v91 = vstv %s40
    %v92 = vadd.f32 %v89, %v91
    %v93 = vadd.f32 %v90, %v91
    %94 = vst [vmem:[#allocation7] sm:$0xff] %v92
    %95 = vst [vmem:[#allocation7 + $0x8] sm:$0xff] %v93
    // Predicated region
    $region18: #{tpu_custom_call.1} parent=1 // pred_check
      _
    $region19: #{tpu_custom_call.1} parent=1 // pred_check_branch
      %97 = sbr.rel (0) target = $region21
    $region20: #{tpu_custom_call.1} parent=1 // pred_region
      %s99 = ssub.s32 256, 256
      %100 = vsyncadd [#allocation4], %s99
      %s101 = sshll.u32 [#allocation7], 4
      %s102 = int_to_ptr.vmem [resolvable:$true] %s101
      %107 = dma.vmem_to_hbm [thread:$0]  %s102, 256, %s2, [#allocation4], 128, 128, 8
    $region21: #{tpu_custom_call.1} parent=1 // pred_fallthru
      _
    // Predicated region
    $region22: #{tpu_custom_call.1} parent=1 // pred_check
      _
    $region23: #{tpu_custom_call.1} parent=1 // pred_check_branch
      %109 = sbr.rel (0) target = $region25
    $region24: #{tpu_custom_call.1} parent=1 // pred_region
      %110 = dma.done [#allocation4], 256
    $region25: #{tpu_custom_call.1} parent=1 // pred_fallthru
      _
    %111 = vsyncpa [#allocation3], 1
    %112 = vsyncpa [#allocation4], 1
    %113 = vsyncpa [#allocation5], 1

</llo_original>
